<compile_context>
chip_gen: v7x
topology: tpu7x:2x2x1
jax: 0.10.0
libtpu: 0.0.40
codegen_flags: <defaults>
</compile_context>

<pallas_src>
import numpy as np
import jax
import jax.numpy as jnp
from jax.experimental import pallas as pl
from jax.experimental.pallas import tpu as pltpu


# ---------------- parameter construction (plain numpy glue) ----------------

def dct_mat(size):
    i = np.arange(size)[:, None]
    j = np.arange(size)[None, :]
    scale = np.where(i == 0, np.sqrt(1.0 / size), np.sqrt(2.0 / size))
    return (scale * np.cos((j + 0.5) * np.pi * i / size)).astype(np.float32)


def generate_filter(start, end, size):
    i = np.arange(size)[:, None]
    j = np.arange(size)[None, :]
    s = i + j
    return np.where((s > end) | (s < start), 0.0, 1.0).astype(np.float32)


# ------------------------------ Pallas kernel -------------------------------

def _make_fad_kernel(num_bands):
    def fad_kernel(af_ref, ai_ref, filt_ref, x_ref, o_ref):
        # af_ref: (SS, SS)  forward  DCT kron matrix  kron(D,D)^T
        # ai_ref: (SS, SS)  inverse  DCT kron matrix  kron(D,D)
        # filt_ref: (num_bands, SS)  precomputed band filters (flattened)
        # x_ref:  (1, C, SS)   all channels of one sample, lane-dense
        # o_ref:  (1, num_bands, C, SS)  output in final channel order
        a_fwd = af_ref[...]
        a_inv = ai_ref[...]
        x = x_ref[0]                                            # (C, SS)

        # forward 2D DCT for all channels at once: (C, SS) @ (SS, SS)
        xf = jnp.dot(x, a_fwd, preferred_element_type=jnp.float32)

        for i in range(num_bands):
            f = filt_ref[i, :][None, :]                         # (1, SS)
            # band filter + inverse 2D DCT, still one lane-dense matmul
            y = jnp.dot(xf * f, a_inv, preferred_element_type=jnp.float32)
            o_ref[0, i] = y                                     # (C, SS)

    return fad_kernel


# ------------------------------ wrapper -------------------------------------

def fad_head_forward(x, D, base, learnable):
    """x: (N, C, S, S) float32 -> (N, 4*C, S, S) float32 (matches FAD_Head)."""
    N, C, S, _ = x.shape
    SS = S * S
    nb = base.shape[0]  # 4 bands

    # Hoisted, grid-invariant parameter prep (done once, outside the kernel):
    #   filt = base + (2*sigmoid(learnable) - 1)
    filt = (base + 2.0 * jax.nn.sigmoid(learnable) - 1.0).reshape(nb, SS)
    #   row-major vec identity:  vec(A X B) = vec(X) @ kron(A, B^T)^T
    #   => forward  D @ X @ D^T : x_flat @ kron(D, D)^T
    #      inverse  D^T @ X @ D : x_flat @ kron(D, D)
    a_fwd = jnp.kron(D.T, D.T)          # = kron(D, D)^T, (SS, SS)
    a_inv = jnp.kron(D, D)              # (SS, SS)

    xb = x.reshape(N, C, SS)            # contiguous reshape, lane-dense last dim

    out = pl.pallas_call(
        _make_fad_kernel(nb),
        out_shape=jax.ShapeDtypeStruct((N, nb, C, SS), jnp.float32),
        grid=(N,),
        in_specs=[
            pl.BlockSpec((SS, SS), lambda n: (0, 0)),       # kron(D,D)^T (resident)
            pl.BlockSpec((SS, SS), lambda n: (0, 0)),       # kron(D,D)   (resident)
            pl.BlockSpec((nb, SS), lambda n: (0, 0)),       # filters     (resident)
            pl.BlockSpec((1, C, SS), lambda n: (n, 0, 0)),  # one sample, all C
        ],
        out_specs=pl.BlockSpec((1, nb, C, SS), lambda n: (n, 0, 0, 0)),
        compiler_params=pltpu.CompilerParams(
            dimension_semantics=("parallel",)),
    )(a_fwd, a_inv, filt, xb)

    # (N, 4, C, S*S) -> (N, 4*C, S, S): pure contiguous reshape, no transpose.
    return out.reshape(N, nb * C, S, S)


# ------------------------------ main -----------------------------------------

if __name__ == "__main__":
    S = 16          # FAD_Head(size=16)
    N, C = 2, 4     # small NCHW input (2, 4, 16, 16)

    key = jax.random.PRNGKey(0)
    k_x, k_l = jax.random.split(key)
    x = jax.random.normal(k_x, (N, C, S, S), dtype=jnp.float32)

    # deterministic parameters (mirrors FAD_Head.__init__)
    D = jnp.asarray(dct_mat(S))
    bands = [(0, S // 2.82),        # low
             (S // 2.82, S // 2),   # middle
             (S // 2, S * 2),       # high
             (0, S * 2)]            # all
    base = jnp.stack([jnp.asarray(generate_filter(s, e, S)) for s, e in bands])
    learnable = 0.1 * jax.random.normal(k_l, (4, S, S), dtype=jnp.float32)

    fwd = jax.jit(fad_head_forward)
    out = fwd(x, D, base, learnable)
    jax.block_until_ready(out)

    # pure-JAX separable reference (mirrors the PyTorch forward exactly)
    filt = base + (2.0 * jax.nn.sigmoid(learnable) - 1.0)
    DT = D.T
    xf = jnp.einsum('ij,ncjk,kl->ncil', D, x, DT)
    ref = jnp.concatenate(
        [jnp.einsum('ij,ncjk,kl->ncil', DT, xf * filt[i], D) for i in range(4)],
        axis=1)
    assert out.shape == (N, 4 * C, S, S)
    assert jnp.allclose(out, ref, atol=1e-4, rtol=1e-4), "mismatch vs reference"

    print("KERNEL_OK")
</pallas_src>

<mosaic_0001>
module attributes {stable_mosaic.version = 11 : i64} {
  func.func @fad_kernel(%arg0: i32, %arg1: memref<256x256xf32, #tpu.memory_space<vmem>>, %arg2: memref<256x256xf32, #tpu.memory_space<vmem>>, %arg3: memref<4x256xf32, #tpu.memory_space<vmem>>, %arg4: memref<1x4x256xf32, #tpu.memory_space<vmem>>, %arg5: memref<1x4x4x256xf32, #tpu.memory_space<vmem>>) attributes {dimension_semantics = [#tpu.dimension_semantics<parallel>], iteration_bounds = array<i64: 2>, scalar_prefetch = 0 : i64, scratch_operands = 0 : i64, tpu.core_type = #tpu.core_type<tc>, window_params = [{pipeline_mode = #tpu.pipeline_mode<synchronous>, transform_indices = @transform_0, window_bounds = array<i64: 256, 256>}, {pipeline_mode = #tpu.pipeline_mode<synchronous>, transform_indices = @transform_1, window_bounds = array<i64: 256, 256>}, {pipeline_mode = #tpu.pipeline_mode<synchronous>, transform_indices = @transform_2, window_bounds = array<i64: 4, 256>}, {transform_indices = @transform_3, window_bounds = array<i64: 1, 4, 256>}, {transform_indices = @transform_4, window_bounds = array<i64: 1, 4, 4, 256>}]} {
    %c0 = arith.constant 0 : index
    %c0_0 = arith.constant 0 : index
    %0 = vector.load %arg1[%c0, %c0_0] : memref<256x256xf32, #tpu.memory_space<vmem>>, vector<256x256xf32>
    %c0_1 = arith.constant 0 : index
    %c0_2 = arith.constant 0 : index
    %1 = vector.load %arg2[%c0_1, %c0_2] : memref<256x256xf32, #tpu.memory_space<vmem>>, vector<256x256xf32>
    %c0_3 = arith.constant 0 : index
    %c0_4 = arith.constant 0 : index
    %c0_5 = arith.constant 0 : index
    %2 = vector.load %arg4[%c0_3, %c0_4, %c0_5] : memref<1x4x256xf32, #tpu.memory_space<vmem>>, vector<1x4x256xf32>
    %3 = vector.shape_cast %2 : vector<1x4x256xf32> to vector<4x256xf32>
    %cst = arith.constant dense<0.000000e+00> : vector<4x256xf32>
    %4 = tpu.matmul %3, %0, %cst {dimension_numbers = #tpu.dot_dimension_numbers<[1], [0], [0], [1], [0, 0, 1, 1], [], []>} : vector<4x256xf32>, vector<256x256xf32>, vector<4x256xf32> -> vector<4x256xf32>
    %c0_6 = arith.constant 0 : index
    %c0_7 = arith.constant 0 : index
    %5 = vector.load %arg3[%c0_6, %c0_7] : memref<4x256xf32, #tpu.memory_space<vmem>>, vector<1x256xf32>
    %6 = vector.shape_cast %5 : vector<1x256xf32> to vector<256xf32>
    %7 = vector.shape_cast %6 : vector<256xf32> to vector<1x256xf32>
    %8 = vector.broadcast %7 : vector<1x256xf32> to vector<4x256xf32>
    %9 = arith.mulf %4, %8 : vector<4x256xf32>
    %cst_8 = arith.constant dense<0.000000e+00> : vector<4x256xf32>
    %10 = tpu.matmul %9, %1, %cst_8 {dimension_numbers = #tpu.dot_dimension_numbers<[1], [0], [0], [1], [0, 0, 1, 1], [], []>} : vector<4x256xf32>, vector<256x256xf32>, vector<4x256xf32> -> vector<4x256xf32>
    %c0_9 = arith.constant 0 : index
    %c0_10 = arith.constant 0 : index
    %c0_11 = arith.constant 0 : index
    %c0_12 = arith.constant 0 : index
    %11 = vector.load %arg5[%c0_9, %c0_10, %c0_11, %c0_12] : memref<1x4x4x256xf32, #tpu.memory_space<vmem>>, vector<1x1x4x256xf32>
    %12 = vector.shape_cast %11 : vector<1x1x4x256xf32> to vector<4x256xf32>
    %13 = vector.shape_cast %10 : vector<4x256xf32> to vector<1x1x4x256xf32>
    tpu.vector_store %arg5[%c0_9, %c0_10, %c0_11, %c0_12], %13 {strides = array<i32>} : memref<1x4x4x256xf32, #tpu.memory_space<vmem>>, vector<1x1x4x256xf32>,
    %c1 = arith.constant 1 : index
    %c0_13 = arith.constant 0 : index
    %14 = vector.load %arg3[%c1, %c0_13] : memref<4x256xf32, #tpu.memory_space<vmem>>, vector<1x256xf32>
    %15 = vector.shape_cast %14 : vector<1x256xf32> to vector<256xf32>
    %16 = vector.shape_cast %15 : vector<256xf32> to vector<1x256xf32>
    %17 = vector.broadcast %16 : vector<1x256xf32> to vector<4x256xf32>
    %18 = arith.mulf %4, %17 : vector<4x256xf32>
    %cst_14 = arith.constant dense<0.000000e+00> : vector<4x256xf32>
    %19 = tpu.matmul %18, %1, %cst_14 {dimension_numbers = #tpu.dot_dimension_numbers<[1], [0], [0], [1], [0, 0, 1, 1], [], []>} : vector<4x256xf32>, vector<256x256xf32>, vector<4x256xf32> -> vector<4x256xf32>
    %c0_15 = arith.constant 0 : index
    %c1_16 = arith.constant 1 : index
    %c0_17 = arith.constant 0 : index
    %c0_18 = arith.constant 0 : index
    %20 = vector.load %arg5[%c0_15, %c1_16, %c0_17, %c0_18] : memref<1x4x4x256xf32, #tpu.memory_space<vmem>>, vector<1x1x4x256xf32>
    %21 = vector.shape_cast %20 : vector<1x1x4x256xf32> to vector<4x256xf32>
    %22 = vector.shape_cast %19 : vector<4x256xf32> to vector<1x1x4x256xf32>
    tpu.vector_store %arg5[%c0_15, %c1_16, %c0_17, %c0_18], %22 {strides = array<i32>} : memref<1x4x4x256xf32, #tpu.memory_space<vmem>>, vector<1x1x4x256xf32>,
    %c2 = arith.constant 2 : index
    %c0_19 = arith.constant 0 : index
    %23 = vector.load %arg3[%c2, %c0_19] : memref<4x256xf32, #tpu.memory_space<vmem>>, vector<1x256xf32>
    %24 = vector.shape_cast %23 : vector<1x256xf32> to vector<256xf32>
    %25 = vector.shape_cast %24 : vector<256xf32> to vector<1x256xf32>
    %26 = vector.broadcast %25 : vector<1x256xf32> to vector<4x256xf32>
    %27 = arith.mulf %4, %26 : vector<4x256xf32>
    %cst_20 = arith.constant dense<0.000000e+00> : vector<4x256xf32>
    %28 = tpu.matmul %27, %1, %cst_20 {dimension_numbers = #tpu.dot_dimension_numbers<[1], [0], [0], [1], [0, 0, 1, 1], [], []>} : vector<4x256xf32>, vector<256x256xf32>, vector<4x256xf32> -> vector<4x256xf32>
    %c0_21 = arith.constant 0 : index
    %c2_22 = arith.constant 2 : index
    %c0_23 = arith.constant 0 : index
    %c0_24 = arith.constant 0 : index
    %29 = vector.load %arg5[%c0_21, %c2_22, %c0_23, %c0_24] : memref<1x4x4x256xf32, #tpu.memory_space<vmem>>, vector<1x1x4x256xf32>
    %30 = vector.shape_cast %29 : vector<1x1x4x256xf32> to vector<4x256xf32>
    %31 = vector.shape_cast %28 : vector<4x256xf32> to vector<1x1x4x256xf32>
    tpu.vector_store %arg5[%c0_21, %c2_22, %c0_23, %c0_24], %31 {strides = array<i32>} : memref<1x4x4x256xf32, #tpu.memory_space<vmem>>, vector<1x1x4x256xf32>,
    %c3 = arith.constant 3 : index
    %c0_25 = arith.constant 0 : index
    %32 = vector.load %arg3[%c3, %c0_25] : memref<4x256xf32, #tpu.memory_space<vmem>>, vector<1x256xf32>
    %33 = vector.shape_cast %32 : vector<1x256xf32> to vector<256xf32>
    %34 = vector.shape_cast %33 : vector<256xf32> to vector<1x256xf32>
    %35 = vector.broadcast %34 : vector<1x256xf32> to vector<4x256xf32>
    %36 = arith.mulf %4, %35 : vector<4x256xf32>
    %cst_26 = arith.constant dense<0.000000e+00> : vector<4x256xf32>
    %37 = tpu.matmul %36, %1, %cst_26 {dimension_numbers = #tpu.dot_dimension_numbers<[1], [0], [0], [1], [0, 0, 1, 1], [], []>} : vector<4x256xf32>, vector<256x256xf32>, vector<4x256xf32> -> vector<4x256xf32>
    %c0_27 = arith.constant 0 : index
    %c3_28 = arith.constant 3 : index
    %c0_29 = arith.constant 0 : index
    %c0_30 = arith.constant 0 : index
    %38 = vector.load %arg5[%c0_27, %c3_28, %c0_29, %c0_30] : memref<1x4x4x256xf32, #tpu.memory_space<vmem>>, vector<1x1x4x256xf32>
    %39 = vector.shape_cast %38 : vector<1x1x4x256xf32> to vector<4x256xf32>
    %40 = vector.shape_cast %37 : vector<4x256xf32> to vector<1x1x4x256xf32>
    tpu.vector_store %arg5[%c0_27, %c3_28, %c0_29, %c0_30], %40 {strides = array<i32>} : memref<1x4x4x256xf32, #tpu.memory_space<vmem>>, vector<1x1x4x256xf32>,
    return
  }
  func.func @transform_0(%arg0: i32) -> (i32, i32) {
    %c0_i32 = arith.constant 0 : i32
    %c0_i32_0 = arith.constant 0 : i32
    %c0_i32_1 = arith.constant 0 : i32
    return %c0_i32, %c0_i32_0 : i32, i32
  }
  func.func @transform_1(%arg0: i32) -> (i32, i32) {
    %c0_i32 = arith.constant 0 : i32
    %c0_i32_0 = arith.constant 0 : i32
    %c0_i32_1 = arith.constant 0 : i32
    return %c0_i32, %c0_i32_0 : i32, i32
  }
  func.func @transform_2(%arg0: i32) -> (i32, i32) {
    %c0_i32 = arith.constant 0 : i32
    %c0_i32_0 = arith.constant 0 : i32
    %c0_i32_1 = arith.constant 0 : i32
    return %c0_i32, %c0_i32_0 : i32, i32
  }
  func.func @transform_3(%arg0: i32) -> (i32, i32, i32) {
    %c0_i32 = arith.constant 0 : i32
    %c0_i32_0 = arith.constant 0 : i32
    %c0_i32_1 = arith.constant 0 : i32
    return %arg0, %c0_i32, %c0_i32_0 : i32, i32, i32
  }
  func.func @transform_4(%arg0: i32) -> (i32, i32, i32, i32) {
    %c0_i32 = arith.constant 0 : i32
    %c0_i32_0 = arith.constant 0 : i32
    %c0_i32_1 = arith.constant 0 : i32
    %c0_i32_2 = arith.constant 0 : i32
    return %arg0, %c0_i32, %c0_i32_0, %c0_i32_1 : i32, i32, i32, i32
  }
}

</mosaic_0001>

<llo_original>
// kernel: fad_head_forward.1
$region0: #{fad_head_forward.1}
  #allocation0 [shape = 'u32[]', space=smem, size = 0x4, offset = 0x4, fixed_abs, tag = 'smem constant byte address 0x4 - core index']
  #allocation1 [shape = 'u32[144,128]{1,0:T(1,128)}', space=vmem, size = 0x12000, scoped, tag = 'internal scratch']
  %s0 = inlined_call_operand.vmem [shape: f32[256,256], index: 0, kind: input, shape index: {}]
  %s1 = inlined_call_operand.vmem [shape: f32[256,256], index: 1, kind: input, shape index: {}]
  %s2 = inlined_call_operand.vmem [shape: f32[4,256], index: 2, kind: input, shape index: {}]
  %s3 = inlined_call_operand.vmem [shape: f32[2,4,256], index: 3, kind: input, shape index: {}]
  %s4 = inlined_call_operand.vmem [shape: f32[2,4,4,256], index: 4, kind: output, shape index: {}]
  %s5 = sld [smem:[#allocation0]]
  $region49: #{fad_head_forward.1} parent=0
    _
  %s7 = ssub.s32 1, %s5
  %s8 = scalar_select 0, %s7, %s5
  loop: start=0, step=1, limit=4
  $region2: #{fad_head_forward.1} parent=0 // loop_pre_header
    _
  $region3: #{fad_head_forward.1} parent=0 // loop_header
    %s10 = sphi 0, %s14
    %p11 = scmp.ge.s32.totalorder %s10, 4
    %s18 = sphi 0, %s18
    %s20 = sphi 0, %s18
    %s21 = sphi 0, %s20
    %s35 = sphi 0, %s21
    %s39 = sphi 0, %s39
    %s41 = sphi 0, %s39
    %s42 = sphi 0, %s41
    %s56 = sphi 0, %s42
    %s60 = sphi 0, %s60
    %s62 = sphi 0, %s60
    %s63 = sphi 0, %s62
    %s77 = sphi 0, %s63
    %s83 = sphi 0, %s85
    %s86 = sphi 0, %s83
    %s87 = sphi 0, %s86
    %s103 = sphi 0, %s87
    %s109 = sphi 0, %s111
    %s112 = sphi 0, %s109
    %s113 = sphi 0, %s112
    %s129 = sphi 0, %s113
  $region4: #{fad_head_forward.1} parent=0 // loop_header_branch
    %13 = sbr.rel (%p11) target = $region8
  $region5: #{fad_head_forward.1} parent=0 // loop_body
    %s15 = ssub.s32 %s10, 1
    %s16 = ssub.s32 %s10, 2
    %s17 = sadd.s32 %s10, 1
    %s19 = sadd.s32 %s18, 1
    %p22 = scmp.eq.s32.totalorder %s10, 1
    %p23 = scmp.ne.s32.totalorder %s18, %s20
    %p24 = scmp.eq.s32.totalorder %s10, 0
    %p25 = por %p23, %p24
    %p26 = scmp.ne.s32.totalorder %s18, %s20
    %p27 = scmp.eq.s32.totalorder %s15, 1
    %p28 = por %p26, %p27
    %p29 = scmp.ne.s32.totalorder %s20, %s21
    %p30 = scmp.eq.s32.totalorder %s15, 0
    %p31 = por %p29, %p30
    %p32 = scmp.ne.s32.totalorder %s20, %s21
    %p33 = scmp.eq.s32.totalorder %s16, 1
    %p34 = por %p32, %p33
    %p36 = scmp.ne.s32.totalorder %s21, %s35
    %p37 = scmp.eq.s32.totalorder %s16, 0
    %p38 = por %p36, %p37
    %s40 = sadd.s32 %s39, 1
    %p43 = scmp.eq.s32.totalorder %s10, 1
    %p44 = scmp.ne.s32.totalorder %s39, %s41
    %p45 = scmp.eq.s32.totalorder %s10, 0
    %p46 = por %p44, %p45
    %p47 = scmp.ne.s32.totalorder %s39, %s41
    %p48 = scmp.eq.s32.totalorder %s15, 1
    %p49 = por %p47, %p48
    %p50 = scmp.ne.s32.totalorder %s41, %s42
    %p51 = scmp.eq.s32.totalorder %s15, 0
    %p52 = por %p50, %p51
    %p53 = scmp.ne.s32.totalorder %s41, %s42
    %p54 = scmp.eq.s32.totalorder %s16, 1
    %p55 = por %p53, %p54
    %p57 = scmp.ne.s32.totalorder %s42, %s56
    %p58 = scmp.eq.s32.totalorder %s16, 0
    %p59 = por %p57, %p58
    %s61 = sadd.s32 %s60, 1
    %p64 = scmp.eq.s32.totalorder %s10, 1
    %p65 = scmp.ne.s32.totalorder %s60, %s62
    %p66 = scmp.eq.s32.totalorder %s10, 0
    %p67 = por %p65, %p66
    %p68 = scmp.ne.s32.totalorder %s60, %s62
    %p69 = scmp.eq.s32.totalorder %s15, 1
    %p70 = por %p68, %p69
    %p71 = scmp.ne.s32.totalorder %s62, %s63
    %p72 = scmp.eq.s32.totalorder %s15, 0
    %p73 = por %p71, %p72
    %p74 = scmp.ne.s32.totalorder %s62, %s63
    %p75 = scmp.eq.s32.totalorder %s16, 1
    %p76 = por %p74, %p75
    %p78 = scmp.ne.s32.totalorder %s63, %s77
    %p79 = scmp.eq.s32.totalorder %s16, 0
    %p80 = por %p78, %p79
    %s81 = ssub.s32 %s10, %s17
    %p82 = scmp.eq.s32.totalorder %s81, 0
    %s84 = sadd.s32 %s83, 1
    %s85 = scalar_select %p82, %s83, %s84
    %p88 = pneg %p82
    %p89 = scmp.eq.s32.totalorder %s10, 1
    %p90 = por %p88, %p89
    %p91 = scmp.ne.s32.totalorder %s83, %s86
    %p92 = scmp.eq.s32.totalorder %s10, 0
    %p93 = por %p91, %p92
    %p94 = scmp.ne.s32.totalorder %s83, %s86
    %p95 = scmp.eq.s32.totalorder %s15, 1
    %p96 = por %p94, %p95
    %p97 = scmp.ne.s32.totalorder %s86, %s87
    %p98 = scmp.eq.s32.totalorder %s15, 0
    %p99 = por %p97, %p98
    %p100 = scmp.ne.s32.totalorder %s86, %s87
    %p101 = scmp.eq.s32.totalorder %s16, 1
    %p102 = por %p100, %p101
    %p104 = scmp.ne.s32.totalorder %s87, %s103
    %p105 = scmp.eq.s32.totalorder %s16, 0
    %p106 = por %p104, %p105
    %s107 = ssub.s32 %s10, %s17
    %p108 = scmp.eq.s32.totalorder %s107, 0
    %s110 = sadd.s32 %s109, 1
    %s111 = scalar_select %p108, %s109, %s110
    %p114 = pneg %p108
    %p115 = scmp.eq.s32.totalorder %s10, 1
    %p116 = por %p114, %p115
    %p117 = scmp.ne.s32.totalorder %s109, %s112
    %p118 = scmp.eq.s32.totalorder %s10, 0
    %p119 = por %p117, %p118
    %p120 = scmp.ne.s32.totalorder %s109, %s112
    %p121 = scmp.eq.s32.totalorder %s15, 1
    %p122 = por %p120, %p121
    %p123 = scmp.ne.s32.totalorder %s112, %s113
    %p124 = scmp.eq.s32.totalorder %s15, 0
    %p125 = por %p123, %p124
    %p126 = scmp.ne.s32.totalorder %s112, %s113
    %p127 = scmp.eq.s32.totalorder %s16, 1
    %p128 = por %p126, %p127
    %p130 = scmp.ne.s32.totalorder %s113, %s129
    %p131 = scmp.eq.s32.totalorder %s16, 0
    %p132 = por %p130, %p131
    %p133 = scmp.le.s32.totalorder 1, %s10
    %p134 = scmp.lt.s32.totalorder %s10, 3
    %p135 = pnand %p133, %p134
    %p136 = pneg %p135
    // Predicated region
    $region9: #{fad_head_forward.1} parent=5 // pred_check
      _
    $region10: #{fad_head_forward.1} parent=5 // pred_check_branch
      %138 = sbr.rel (%p135) target = $region12
    $region11: #{fad_head_forward.1} parent=5 // pred_region
      %s139 = ssub.s32 %s10, 1
      // Predicated region
      $region13: #{fad_head_forward.1} parent=11 // pred_check
        %p140 = pneg %p31
      $region14: #{fad_head_forward.1} parent=11 // pred_check_branch
        %142 = sbr.rel (%p140) target = $region16
      $region15: #{fad_head_forward.1} parent=11 // pred_region
        _
      $region16: #{fad_head_forward.1} parent=11 // pred_fallthru
        _
      // Predicated region
      $region17: #{fad_head_forward.1} parent=11 // pred_check
        %p143 = pneg %p52
      $region18: #{fad_head_forward.1} parent=11 // pred_check_branch
        %145 = sbr.rel (%p143) target = $region20
      $region19: #{fad_head_forward.1} parent=11 // pred_region
        _
      $region20: #{fad_head_forward.1} parent=11 // pred_fallthru
        _
      // Predicated region
      $region21: #{fad_head_forward.1} parent=11 // pred_check
        %p146 = pneg %p73
      $region22: #{fad_head_forward.1} parent=11 // pred_check_branch
        %148 = sbr.rel (%p146) target = $region24
      $region23: #{fad_head_forward.1} parent=11 // pred_region
        _
      $region24: #{fad_head_forward.1} parent=11 // pred_fallthru
        _
    $region12: #{fad_head_forward.1} parent=5 // pred_fallthru
      _
    %p149 = scmp.lt.s32.totalorder %s10, 2
    // Predicated region
    $region25: #{fad_head_forward.1} parent=5 // pred_check
      %p150 = pneg %p149
    $region26: #{fad_head_forward.1} parent=5 // pred_check_branch
      %152 = sbr.rel (%p150) target = $region28
    $region27: #{fad_head_forward.1} parent=5 // pred_region
      // Predicated region
      $region29: #{fad_head_forward.1} parent=27 // pred_check
        %p153 = pneg %p93
      $region30: #{fad_head_forward.1} parent=27 // pred_check_branch
        %155 = sbr.rel (%p153) target = $region32
      $region31: #{fad_head_forward.1} parent=27 // pred_region
        %p156 = scmp.lt.s32.totalorder %s10, 1
        %s157 = scalar_select %p156, %s10, 1
        %s158 = smul.addr %s157, 2
        %s159 = smul.addr %s158, 4
        %s160 = scalar_lea.vmem %s3, %s159
      $region32: #{fad_head_forward.1} parent=27 // pred_fallthru
        _
    $region28: #{fad_head_forward.1} parent=5 // pred_fallthru
      _
    %p161 = scmp.le.s32.totalorder 1, %s10
    %p162 = scmp.lt.s32.totalorder %s10, 3
    %p163 = pnand %p161, %p162
    %p164 = pneg %p163
    // Predicated region
    $region33: #{fad_head_forward.1} parent=5 // pred_check
      _
    $region34: #{fad_head_forward.1} parent=5 // pred_check_branch
      %166 = sbr.rel (%p163) target = $region36
    $region35: #{fad_head_forward.1} parent=5 // pred_region
      %s167 = ssub.s32 %s10, 1
      %p168 = pneg %p31
      %p169 = pneg %p28
      %p170 = pneg %p52
      %p171 = pneg %p49
      %p172 = pneg %p73
      %p173 = pneg %p70
      %p174 = scmp.lt.s32.totalorder %s15, 1
      %s175 = scalar_select %p174, %s15, 1
      %s176 = smul.addr %s175, 2
      %s177 = smul.addr %s176, 4
      %s178 = scalar_lea.vmem %s3, %s177
      %p179 = pneg %p99
      %p180 = pneg %p96
      %p181 = pneg %p125
      %p182 = pneg %p122
      %p183 = scmp.lt.s32.totalorder %s15, 1
      %s184 = scalar_select %p183, %s15, 1
      %s185 = smul.addr %s184, 8
      %s186 = smul.addr %s185, 4
      %s187 = scalar_lea.vmem %s4, %s186
      %p188 = scmp.lt.s32.totalorder %s15, 1
      %s189 = scalar_select %p188, %s15, 1
      %s190 = smul.addr %s189, 2
      %s191 = smul.addr %s190, 4
      %s192 = scalar_lea.vmem %s3, %s191
      %p193 = scmp.lt.s32.totalorder %s15, 1
      %s194 = scalar_select %p193, %s15, 1
      %s195 = smul.addr %s194, 8
      %s196 = smul.addr %s195, 4
      %s197 = scalar_lea.vmem %s4, %s196
      %v198 = vld [vmem:[%s0] sm:$0xff]
      %v199 = vld [vmem:[%s0 + $0x8] sm:$0xff]
      %v200 = vld [vmem:[%s0 + $0x10] sm:$0xff]
      %v201 = vld [vmem:[%s0 + $0x18] sm:$0xff]
      %v202 = vld [vmem:[%s0 + $0x20] sm:$0xff]
      %v203 = vld [vmem:[%s0 + $0x28] sm:$0xff]
      %v204 = vld [vmem:[%s0 + $0x30] sm:$0xff]
      %v205 = vld [vmem:[%s0 + $0x38] sm:$0xff]
      %v206 = vld [vmem:[%s0 + $0x40] sm:$0xff]
      %v207 = vld [vmem:[%s0 + $0x48] sm:$0xff]
      %v208 = vld [vmem:[%s0 + $0x50] sm:$0xff]
      %v209 = vld [vmem:[%s0 + $0x58] sm:$0xff]
      %v210 = vld [vmem:[%s0 + $0x60] sm:$0xff]
      %v211 = vld [vmem:[%s0 + $0x68] sm:$0xff]
      %v212 = vld [vmem:[%s0 + $0x70] sm:$0xff]
      %v213 = vld [vmem:[%s0 + $0x78] sm:$0xff]
      %v214 = vld [vmem:[%s0 + $0x80] sm:$0xff]
      %v215 = vld [vmem:[%s0 + $0x88] sm:$0xff]
      %v216 = vld [vmem:[%s0 + $0x90] sm:$0xff]
      %v217 = vld [vmem:[%s0 + $0x98] sm:$0xff]
      %v218 = vld [vmem:[%s0 + $0xa0] sm:$0xff]
      %v219 = vld [vmem:[%s0 + $0xa8] sm:$0xff]
      %v220 = vld [vmem:[%s0 + $0xb0] sm:$0xff]
      %v221 = vld [vmem:[%s0 + $0xb8] sm:$0xff]
      %v222 = vld [vmem:[%s0 + $0xc0] sm:$0xff]
      %v223 = vld [vmem:[%s0 + $0xc8] sm:$0xff]
      %v224 = vld [vmem:[%s0 + $0xd0] sm:$0xff]
      %v225 = vld [vmem:[%s0 + $0xd8] sm:$0xff]
      %v226 = vld [vmem:[%s0 + $0xe0] sm:$0xff]
      %v227 = vld [vmem:[%s0 + $0xe8] sm:$0xff]
      %v228 = vld [vmem:[%s0 + $0xf0] sm:$0xff]
      %v229 = vld [vmem:[%s0 + $0xf8] sm:$0xff]
      %v230 = vld [vmem:[%s0 + $0x100] sm:$0xff]
      %v231 = vld [vmem:[%s0 + $0x108] sm:$0xff]
      %v232 = vld [vmem:[%s0 + $0x110] sm:$0xff]
      %v233 = vld [vmem:[%s0 + $0x118] sm:$0xff]
      %v234 = vld [vmem:[%s0 + $0x120] sm:$0xff]
      %v235 = vld [vmem:[%s0 + $0x128] sm:$0xff]
      %v236 = vld [vmem:[%s0 + $0x130] sm:$0xff]
      %v237 = vld [vmem:[%s0 + $0x138] sm:$0xff]
      %v238 = vld [vmem:[%s0 + $0x140] sm:$0xff]
      %v239 = vld [vmem:[%s0 + $0x148] sm:$0xff]
      %v240 = vld [vmem:[%s0 + $0x150] sm:$0xff]
      %v241 = vld [vmem:[%s0 + $0x158] sm:$0xff]
      %v242 = vld [vmem:[%s0 + $0x160] sm:$0xff]
      %v243 = vld [vmem:[%s0 + $0x168] sm:$0xff]
      %v244 = vld [vmem:[%s0 + $0x170] sm:$0xff]
      %v245 = vld [vmem:[%s0 + $0x178] sm:$0xff]
      %v246 = vld [vmem:[%s0 + $0x180] sm:$0xff]
      %v247 = vld [vmem:[%s0 + $0x188] sm:$0xff]
      %v248 = vld [vmem:[%s0 + $0x190] sm:$0xff]
      %v249 = vld [vmem:[%s0 + $0x198] sm:$0xff]
      %v250 = vld [vmem:[%s0 + $0x1a0] sm:$0xff]
      %v251 = vld [vmem:[%s0 + $0x1a8] sm:$0xff]
      %v252 = vld [vmem:[%s0 + $0x1b0] sm:$0xff]
      %v253 = vld [vmem:[%s0 + $0x1b8] sm:$0xff]
      %v254 = vld [vmem:[%s0 + $0x1c0] sm:$0xff]
      %v255 = vld [vmem:[%s0 + $0x1c8] sm:$0xff]
      %v256 = vld [vmem:[%s0 + $0x1d0] sm:$0xff]
      %v257 = vld [vmem:[%s0 + $0x1d8] sm:$0xff]
      %v258 = vld [vmem:[%s0 + $0x1e0] sm:$0xff]
      %v259 = vld [vmem:[%s0 + $0x1e8] sm:$0xff]
      %v260 = vld [vmem:[%s0 + $0x1f0] sm:$0xff]
      %v261 = vld [vmem:[%s0 + $0x1f8] sm:$0xff]
      %v262 = vld [vmem:[%s1] sm:$0xff]
      %v263 = vld [vmem:[%s1 + $0x8] sm:$0xff]
      %v264 = vld [vmem:[%s1 + $0x10] sm:$0xff]
      %v265 = vld [vmem:[%s1 + $0x18] sm:$0xff]
      %v266 = vld [vmem:[%s1 + $0x20] sm:$0xff]
      %v267 = vld [vmem:[%s1 + $0x28] sm:$0xff]
      %v268 = vld [vmem:[%s1 + $0x30] sm:$0xff]
      %v269 = vld [vmem:[%s1 + $0x38] sm:$0xff]
      %v270 = vld [vmem:[%s1 + $0x40] sm:$0xff]
      %v271 = vld [vmem:[%s1 + $0x48] sm:$0xff]
      %v272 = vld [vmem:[%s1 + $0x50] sm:$0xff]
      %v273 = vld [vmem:[%s1 + $0x58] sm:$0xff]
      %v274 = vld [vmem:[%s1 + $0x60] sm:$0xff]
      %v275 = vld [vmem:[%s1 + $0x68] sm:$0xff]
      %v276 = vld [vmem:[%s1 + $0x70] sm:$0xff]
      %v277 = vld [vmem:[%s1 + $0x78] sm:$0xff]
      %v278 = vld [vmem:[%s1 + $0x80] sm:$0xff]
      %v279 = vld [vmem:[%s1 + $0x88] sm:$0xff]
      %v280 = vld [vmem:[%s1 + $0x90] sm:$0xff]
      %v281 = vld [vmem:[%s1 + $0x98] sm:$0xff]
      %v282 = vld [vmem:[%s1 + $0xa0] sm:$0xff]
      %v283 = vld [vmem:[%s1 + $0xa8] sm:$0xff]
      %v284 = vld [vmem:[%s1 + $0xb0] sm:$0xff]
      %v285 = vld [vmem:[%s1 + $0xb8] sm:$0xff]
      %v286 = vld [vmem:[%s1 + $0xc0] sm:$0xff]
      %v287 = vld [vmem:[%s1 + $0xc8] sm:$0xff]
      %v288 = vld [vmem:[%s1 + $0xd0] sm:$0xff]
      %v289 = vld [vmem:[%s1 + $0xd8] sm:$0xff]
      %v290 = vld [vmem:[%s1 + $0xe0] sm:$0xff]
      %v291 = vld [vmem:[%s1 + $0xe8] sm:$0xff]
      %v292 = vld [vmem:[%s1 + $0xf0] sm:$0xff]
      %v293 = vld [vmem:[%s1 + $0xf8] sm:$0xff]
      %v294 = vld [vmem:[%s1 + $0x100] sm:$0xff]
      %v295 = vld [vmem:[%s1 + $0x108] sm:$0xff]
      %v296 = vld [vmem:[%s1 + $0x110] sm:$0xff]
      %v297 = vld [vmem:[%s1 + $0x118] sm:$0xff]
      %v298 = vld [vmem:[%s1 + $0x120] sm:$0xff]
      %v299 = vld [vmem:[%s1 + $0x128] sm:$0xff]
      %v300 = vld [vmem:[%s1 + $0x130] sm:$0xff]
      %v301 = vld [vmem:[%s1 + $0x138] sm:$0xff]
      %v302 = vld [vmem:[%s1 + $0x140] sm:$0xff]
      %v303 = vld [vmem:[%s1 + $0x148] sm:$0xff]
      %v304 = vld [vmem:[%s1 + $0x150] sm:$0xff]
      %v305 = vld [vmem:[%s1 + $0x158] sm:$0xff]
      %v306 = vld [vmem:[%s1 + $0x160] sm:$0xff]
      %v307 = vld [vmem:[%s1 + $0x168] sm:$0xff]
      %v308 = vld [vmem:[%s1 + $0x170] sm:$0xff]
      %v309 = vld [vmem:[%s1 + $0x178] sm:$0xff]
      %v310 = vld [vmem:[%s1 + $0x180] sm:$0xff]
      %v311 = vld [vmem:[%s1 + $0x188] sm:$0xff]
      %v312 = vld [vmem:[%s1 + $0x190] sm:$0xff]
      %v313 = vld [vmem:[%s1 + $0x198] sm:$0xff]
      %v314 = vld [vmem:[%s1 + $0x1a0] sm:$0xff]
      %v315 = vld [vmem:[%s1 + $0x1a8] sm:$0xff]
      %v316 = vld [vmem:[%s1 + $0x1b0] sm:$0xff]
      %v317 = vld [vmem:[%s1 + $0x1b8] sm:$0xff]
      %v318 = vld [vmem:[%s1 + $0x1c0] sm:$0xff]
      %v319 = vld [vmem:[%s1 + $0x1c8] sm:$0xff]
      %v320 = vld [vmem:[%s1 + $0x1d0] sm:$0xff]
      %v321 = vld [vmem:[%s1 + $0x1d8] sm:$0xff]
      %v322 = vld [vmem:[%s1 + $0x1e0] sm:$0xff]
      %v323 = vld [vmem:[%s1 + $0x1e8] sm:$0xff]
      %v324 = vld [vmem:[%s1 + $0x1f0] sm:$0xff]
      %v325 = vld [vmem:[%s1 + $0x1f8] sm:$0xff]
      %v326 = vld [vmem:[%s192] sm:$0xff]
      %v328 = vcombine.high %v326, %v326
      %330 = vmatprep.subr.mxu0 %v199
      %331 = vmatpush1.msra.mxu0 %v198
      %332 = vmatprep.subr.mxu0 %v201
      %333 = vmatpush1.msra.mxu0 %v200
      %334 = vmatprep.subr.mxu0 %v203
      %335 = vmatpush1.msra.mxu0 %v202
      %336 = vmatprep.subr.mxu0 %v205
      %337 = vmatpush1.msra.mxu0 %v204
      %338 = vmatprep.subr.mxu0 %v207
      %339 = vmatpush1.msra.mxu0 %v206
      %340 = vmatprep.subr.mxu0 %v209
      %341 = vmatpush1.msra.mxu0 %v208
      %342 = vmatprep.subr.mxu0 %v211
      %343 = vmatpush1.msra.mxu0 %v210
      %344 = vmatprep.subr.mxu0 %v213
      %345 = vmatpush1.msra.mxu0 %v212
      %346 = vmatprep.subr.mxu0 %v215
      %347 = vmatpush1.msra.mxu0 %v214
      %348 = vmatprep.subr.mxu0 %v217
      %349 = vmatpush1.msra.mxu0 %v216
      %350 = vmatprep.subr.mxu0 %v219
      %351 = vmatpush1.msra.mxu0 %v218
      %352 = vmatprep.subr.mxu0 %v221
      %353 = vmatpush1.msra.mxu0 %v220
      %354 = vmatprep.subr.mxu0 %v223
      %355 = vmatpush1.msra.mxu0 %v222
      %356 = vmatprep.subr.mxu0 %v225
      %357 = vmatpush1.msra.mxu0 %v224
      %358 = vmatprep.subr.mxu0 %v227
      %359 = vmatpush1.msra.mxu0 %v226
      %360 = vmatprep.subr.mxu0 %v229
      %361 = vmatpush1.msra.mxu0 %v228
      %362 = vmatprep.subr.mxu0 %v231
      %363 = vmatpush1.msra.mxu0 %v230
      %364 = vmatprep.subr.mxu0 %v233
      %365 = vmatpush1.msra.mxu0 %v232
      %366 = vmatprep.subr.mxu0 %v235
      %367 = vmatpush1.msra.mxu0 %v234
      %368 = vmatprep.subr.mxu0 %v237
      %369 = vmatpush1.msra.mxu0 %v236
      %370 = vmatprep.subr.mxu0 %v239
      %371 = vmatpush1.msra.mxu0 %v238
      %372 = vmatprep.subr.mxu0 %v241
      %373 = vmatpush1.msra.mxu0 %v240
      %374 = vmatprep.subr.mxu0 %v243
      %375 = vmatpush1.msra.mxu0 %v242
      %376 = vmatprep.subr.mxu0 %v245
      %377 = vmatpush1.msra.mxu0 %v244
      %378 = vmatprep.subr.mxu0 %v247
      %379 = vmatpush1.msra.mxu0 %v246
      %380 = vmatprep.subr.mxu0 %v249
      %381 = vmatpush1.msra.mxu0 %v248
      %382 = vmatprep.subr.mxu0 %v251
      %383 = vmatpush1.msra.mxu0 %v250
      %384 = vmatprep.subr.mxu0 %v253
      %385 = vmatpush1.msra.mxu0 %v252
      %386 = vmatprep.subr.mxu0 %v255
      %387 = vmatpush1.msra.mxu0 %v254
      %388 = vmatprep.subr.mxu0 %v257
      %389 = vmatpush1.msra.mxu0 %v256
      %390 = vmatprep.subr.mxu0 %v259
      %391 = vmatpush1.msra.mxu0 %v258
      %392 = vmatprep.subr.mxu0 %v261
      %393 = vmatpush1.msra.mxu0 %v260
      %394 = vmatprep.mubr.f32.mxu0 %v328
      %395 = vmatmul.mubr.f32.gmra.mrb[0].mxu0 %v326
      %v396 = vpop.f32.mrb[0].mxu0
      %v397 = vadd.f32 0.0, %v396
      %v398 = vpop.f32.mrb[0].mxu0
      %v399 = vadd.f32 0.0, %v398
      %400 = vdwg.mxu0
      %v401 = vld [vmem:[%s2] ss:$4 sm:$0x3]
      %v403 = vlaneseq
      %v404 = vshrl.u32 %v403, 7
      %v405 = vsub.s32 0, %v404
      %v406 = vrot.slane %v401, %v405
      %v407 = vlaneseq
      %v408 = vshrl.u32 %v407, 7
      %v409 = vsub.s32 1, %v408
      %v410 = vrot.slane %v401, %v409
      %v413 = vmul.f32 %v397, %v406
      %v414 = vmul.f32 %v399, %v410
      %415 = vmatprep.subr.mxu0 %v263
      %416 = vmatpush1.msra.mxu0 %v262
      %417 = vmatprep.subr.mxu0 %v265
      %418 = vmatpush1.msra.mxu0 %v264
      %419 = vmatprep.subr.mxu0 %v267
      %420 = vmatpush1.msra.mxu0 %v266
      %421 = vmatprep.subr.mxu0 %v269
      %422 = vmatpush1.msra.mxu0 %v268
      %423 = vmatprep.subr.mxu0 %v271
      %424 = vmatpush1.msra.mxu0 %v270
      %425 = vmatprep.subr.mxu0 %v273
      %426 = vmatpush1.msra.mxu0 %v272
      %427 = vmatprep.subr.mxu0 %v275
      %428 = vmatpush1.msra.mxu0 %v274
      %429 = vmatprep.subr.mxu0 %v277
      %430 = vmatpush1.msra.mxu0 %v276
      %431 = vmatprep.subr.mxu0 %v279
      %432 = vmatpush1.msra.mxu0 %v278
      %433 = vmatprep.subr.mxu0 %v281
      %434 = vmatpush1.msra.mxu0 %v280
      %435 = vmatprep.subr.mxu0 %v283
      %436 = vmatpush1.msra.mxu0 %v282
      %437 = vmatprep.subr.mxu0 %v285
      %438 = vmatpush1.msra.mxu0 %v284
      %439 = vmatprep.subr.mxu0 %v287
      %440 = vmatpush1.msra.mxu0 %v286
      %441 = vmatprep.subr.mxu0 %v289
      %442 = vmatpush1.msra.mxu0 %v288
      %443 = vmatprep.subr.mxu0 %v291
      %444 = vmatpush1.msra.mxu0 %v290
      %445 = vmatprep.subr.mxu0 %v293
      %446 = vmatpush1.msra.mxu0 %v292
      %447 = vmatprep.subr.mxu0 %v295
      %448 = vmatpush1.msra.mxu0 %v294
      %449 = vmatprep.subr.mxu0 %v297
      %450 = vmatpush1.msra.mxu0 %v296
      %451 = vmatprep.subr.mxu0 %v299
      %452 = vmatpush1.msra.mxu0 %v298
      %453 = vmatprep.subr.mxu0 %v301
      %454 = vmatpush1.msra.mxu0 %v300
      %455 = vmatprep.subr.mxu0 %v303
      %456 = vmatpush1.msra.mxu0 %v302
      %457 = vmatprep.subr.mxu0 %v305
      %458 = vmatpush1.msra.mxu0 %v304
      %459 = vmatprep.subr.mxu0 %v307
      %460 = vmatpush1.msra.mxu0 %v306
      %461 = vmatprep.subr.mxu0 %v309
      %462 = vmatpush1.msra.mxu0 %v308
      %463 = vmatprep.subr.mxu0 %v311
      %464 = vmatpush1.msra.mxu0 %v310
      %465 = vmatprep.subr.mxu0 %v313
      %466 = vmatpush1.msra.mxu0 %v312
      %467 = vmatprep.subr.mxu0 %v315
      %468 = vmatpush1.msra.mxu0 %v314
      %469 = vmatprep.subr.mxu0 %v317
      %470 = vmatpush1.msra.mxu0 %v316
      %471 = vmatprep.subr.mxu0 %v319
      %472 = vmatpush1.msra.mxu0 %v318
      %473 = vmatprep.subr.mxu0 %v321
      %474 = vmatpush1.msra.mxu0 %v320
      %475 = vmatprep.subr.mxu0 %v323
      %476 = vmatpush1.msra.mxu0 %v322
      %477 = vmatprep.subr.mxu0 %v325
      %478 = vmatpush1.msra.mxu0 %v324
      %479 = vmatprep.mubr.f32.mxu0 %v414
      %480 = vmatmul.mubr.f32.gmra.mrb[0].mxu0 %v413
      %v481 = vpop.f32.mrb[0].mxu0
      %v482 = vadd.f32 0.0, %v481
      %v483 = vpop.f32.mrb[0].mxu0
      %v484 = vadd.f32 0.0, %v483
      %485 = vdwg.mxu0
      %v488 = vcombine.low %v482, %v484
      %490 = vst [vmem:[%s197] sm:$0xff] %v488
      %s491 = scalar_lea.vmem %s2, 1
      %v492 = vld [vmem:[%s491] ss:$4 sm:$0x3]
      %v494 = vlaneseq
      %v495 = vshrl.u32 %v494, 7
      %v496 = vsub.s32 0, %v495
      %v497 = vrot.slane %v492, %v496
      %v498 = vlaneseq
      %v499 = vshrl.u32 %v498, 7
      %v500 = vsub.s32 1, %v499
      %v501 = vrot.slane %v492, %v500
      %v504 = vmul.f32 %v397, %v497
      %v505 = vmul.f32 %v399, %v501
      %506 = vmatprep.subr.mxu0 %v263
      %507 = vmatpush1.msra.mxu0 %v262
      %508 = vmatprep.subr.mxu0 %v265
      %509 = vmatpush1.msra.mxu0 %v264
      %510 = vmatprep.subr.mxu0 %v267
      %511 = vmatpush1.msra.mxu0 %v266
      %512 = vmatprep.subr.mxu0 %v269
      %513 = vmatpush1.msra.mxu0 %v268
      %514 = vmatprep.subr.mxu0 %v271
      %515 = vmatpush1.msra.mxu0 %v270
      %516 = vmatprep.subr.mxu0 %v273
      %517 = vmatpush1.msra.mxu0 %v272
      %518 = vmatprep.subr.mxu0 %v275
      %519 = vmatpush1.msra.mxu0 %v274
      %520 = vmatprep.subr.mxu0 %v277
      %521 = vmatpush1.msra.mxu0 %v276
      %522 = vmatprep.subr.mxu0 %v279
      %523 = vmatpush1.msra.mxu0 %v278
      %524 = vmatprep.subr.mxu0 %v281
      %525 = vmatpush1.msra.mxu0 %v280
      %526 = vmatprep.subr.mxu0 %v283
      %527 = vmatpush1.msra.mxu0 %v282
      %528 = vmatprep.subr.mxu0 %v285
      %529 = vmatpush1.msra.mxu0 %v284
      %530 = vmatprep.subr.mxu0 %v287
      %531 = vmatpush1.msra.mxu0 %v286
      %532 = vmatprep.subr.mxu0 %v289
      %533 = vmatpush1.msra.mxu0 %v288
      %534 = vmatprep.subr.mxu0 %v291
      %535 = vmatpush1.msra.mxu0 %v290
      %536 = vmatprep.subr.mxu0 %v293
      %537 = vmatpush1.msra.mxu0 %v292
      %538 = vmatprep.subr.mxu0 %v295
      %539 = vmatpush1.msra.mxu0 %v294
      %540 = vmatprep.subr.mxu0 %v297
      %541 = vmatpush1.msra.mxu0 %v296
      %542 = vmatprep.subr.mxu0 %v299
      %543 = vmatpush1.msra.mxu0 %v298
      %544 = vmatprep.subr.mxu0 %v301
      %545 = vmatpush1.msra.mxu0 %v300
      %546 = vmatprep.subr.mxu0 %v303
      %547 = vmatpush1.msra.mxu0 %v302
      %548 = vmatprep.subr.mxu0 %v305
      %549 = vmatpush1.msra.mxu0 %v304
      %550 = vmatprep.subr.mxu0 %v307
      %551 = vmatpush1.msra.mxu0 %v306
      %552 = vmatprep.subr.mxu0 %v309
      %553 = vmatpush1.msra.mxu0 %v308
      %554 = vmatprep.subr.mxu0 %v311
      %555 = vmatpush1.msra.mxu0 %v310
      %556 = vmatprep.subr.mxu0 %v313
      %557 = vmatpush1.msra.mxu0 %v312
      %558 = vmatprep.subr.mxu0 %v315
      %559 = vmatpush1.msra.mxu0 %v314
      %560 = vmatprep.subr.mxu0 %v317
      %561 = vmatpush1.msra.mxu0 %v316
      %562 = vmatprep.subr.mxu0 %v319
      %563 = vmatpush1.msra.mxu0 %v318
      %564 = vmatprep.subr.mxu0 %v321
      %565 = vmatpush1.msra.mxu0 %v320
      %566 = vmatprep.subr.mxu0 %v323
      %567 = vmatpush1.msra.mxu0 %v322
      %568 = vmatprep.subr.mxu0 %v325
      %569 = vmatpush1.msra.mxu0 %v324
      %570 = vmatprep.mubr.f32.mxu0 %v505
      %571 = vmatmul.mubr.f32.gmra.mrb[0].mxu0 %v504
      %v572 = vpop.f32.mrb[0].mxu0
      %v573 = vadd.f32 0.0, %v572
      %v574 = vpop.f32.mrb[0].mxu0
      %v575 = vadd.f32 0.0, %v574
      %576 = vdwg.mxu0
      %v579 = vcombine.low %v573, %v575
      %s581 = scalar_lea.vmem %s197, 8
      %582 = vst [vmem:[%s581] sm:$0xff] %v579
      %s583 = scalar_lea.vmem %s2, 2
      %v584 = vld [vmem:[%s583] ss:$4 sm:$0x3]
      %v586 = vlaneseq
      %v587 = vshrl.u32 %v586, 7
      %v588 = vsub.s32 0, %v587
      %v589 = vrot.slane %v584, %v588
      %v590 = vlaneseq
      %v591 = vshrl.u32 %v590, 7
      %v592 = vsub.s32 1, %v591
      %v593 = vrot.slane %v584, %v592
      %v596 = vmul.f32 %v397, %v589
      %v597 = vmul.f32 %v399, %v593
      %598 = vmatprep.subr.mxu0 %v263
      %599 = vmatpush1.msra.mxu0 %v262
      %600 = vmatprep.subr.mxu0 %v265
      %601 = vmatpush1.msra.mxu0 %v264
      %602 = vmatprep.subr.mxu0 %v267
      %603 = vmatpush1.msra.mxu0 %v266
      %604 = vmatprep.subr.mxu0 %v269
      %605 = vmatpush1.msra.mxu0 %v268
      %606 = vmatprep.subr.mxu0 %v271
      %607 = vmatpush1.msra.mxu0 %v270
      %608 = vmatprep.subr.mxu0 %v273
      %609 = vmatpush1.msra.mxu0 %v272
      %610 = vmatprep.subr.mxu0 %v275
      %611 = vmatpush1.msra.mxu0 %v274
      %612 = vmatprep.subr.mxu0 %v277
      %613 = vmatpush1.msra.mxu0 %v276
      %614 = vmatprep.subr.mxu0 %v279
      %615 = vmatpush1.msra.mxu0 %v278
      %616 = vmatprep.subr.mxu0 %v281
      %617 = vmatpush1.msra.mxu0 %v280
      %618 = vmatprep.subr.mxu0 %v283
      %619 = vmatpush1.msra.mxu0 %v282
      %620 = vmatprep.subr.mxu0 %v285
      %621 = vmatpush1.msra.mxu0 %v284
      %622 = vmatprep.subr.mxu0 %v287
      %623 = vmatpush1.msra.mxu0 %v286
      %624 = vmatprep.subr.mxu0 %v289
      %625 = vmatpush1.msra.mxu0 %v288
      %626 = vmatprep.subr.mxu0 %v291
      %627 = vmatpush1.msra.mxu0 %v290
      %628 = vmatprep.subr.mxu0 %v293
      %629 = vmatpush1.msra.mxu0 %v292
      %630 = vmatprep.subr.mxu0 %v295
      %631 = vmatpush1.msra.mxu0 %v294
      %632 = vmatprep.subr.mxu0 %v297
      %633 = vmatpush1.msra.mxu0 %v296
      %634 = vmatprep.subr.mxu0 %v299
      %635 = vmatpush1.msra.mxu0 %v298
      %636 = vmatprep.subr.mxu0 %v301
      %637 = vmatpush1.msra.mxu0 %v300
      %638 = vmatprep.subr.mxu0 %v303
      %639 = vmatpush1.msra.mxu0 %v302
      %640 = vmatprep.subr.mxu0 %v305
      %641 = vmatpush1.msra.mxu0 %v304
      %642 = vmatprep.subr.mxu0 %v307
      %643 = vmatpush1.msra.mxu0 %v306
      %644 = vmatprep.subr.mxu0 %v309
      %645 = vmatpush1.msra.mxu0 %v308
      %646 = vmatprep.subr.mxu0 %v311
      %647 = vmatpush1.msra.mxu0 %v310
      %648 = vmatprep.subr.mxu0 %v313
      %649 = vmatpush1.msra.mxu0 %v312
      %650 = vmatprep.subr.mxu0 %v315
      %651 = vmatpush1.msra.mxu0 %v314
      %652 = vmatprep.subr.mxu0 %v317
      %653 = vmatpush1.msra.mxu0 %v316
      %654 = vmatprep.subr.mxu0 %v319
      %655 = vmatpush1.msra.mxu0 %v318
      %656 = vmatprep.subr.mxu0 %v321
      %657 = vmatpush1.msra.mxu0 %v320
      %658 = vmatprep.subr.mxu0 %v323
      %659 = vmatpush1.msra.mxu0 %v322
      %660 = vmatprep.subr.mxu0 %v325
      %661 = vmatpush1.msra.mxu0 %v324
      %662 = vmatprep.mubr.f32.mxu0 %v597
      %663 = vmatmul.mubr.f32.gmra.mrb[0].mxu0 %v596
      %v664 = vpop.f32.mrb[0].mxu0
      %v665 = vadd.f32 0.0, %v664
      %v666 = vpop.f32.mrb[0].mxu0
      %v667 = vadd.f32 0.0, %v666
      %668 = vdwg.mxu0
      %v671 = vcombine.low %v665, %v667
      %s673 = scalar_lea.vmem %s197, 16
      %674 = vst [vmem:[%s673] sm:$0xff] %v671
      %s675 = scalar_lea.vmem %s2, 3
      %v676 = vld [vmem:[%s675] ss:$4 sm:$0x3]
      %v678 = vlaneseq
      %v679 = vshrl.u32 %v678, 7
      %v680 = vsub.s32 0, %v679
      %v681 = vrot.slane %v676, %v680
      %v682 = vlaneseq
      %v683 = vshrl.u32 %v682, 7
      %v684 = vsub.s32 1, %v683
      %v685 = vrot.slane %v676, %v684
      %v688 = vmul.f32 %v397, %v681
      %v689 = vmul.f32 %v399, %v685
      %690 = vmatprep.subr.mxu0 %v263
      %691 = vmatpush1.msra.mxu0 %v262
      %692 = vmatprep.subr.mxu0 %v265
      %693 = vmatpush1.msra.mxu0 %v264
      %694 = vmatprep.subr.mxu0 %v267
      %695 = vmatpush1.msra.mxu0 %v266
      %696 = vmatprep.subr.mxu0 %v269
      %697 = vmatpush1.msra.mxu0 %v268
      %698 = vmatprep.subr.mxu0 %v271
      %699 = vmatpush1.msra.mxu0 %v270
      %700 = vmatprep.subr.mxu0 %v273
      %701 = vmatpush1.msra.mxu0 %v272
      %702 = vmatprep.subr.mxu0 %v275
      %703 = vmatpush1.msra.mxu0 %v274
      %704 = vmatprep.subr.mxu0 %v277
      %705 = vmatpush1.msra.mxu0 %v276
      %706 = vmatprep.subr.mxu0 %v279
      %707 = vmatpush1.msra.mxu0 %v278
      %708 = vmatprep.subr.mxu0 %v281
      %709 = vmatpush1.msra.mxu0 %v280
      %710 = vmatprep.subr.mxu0 %v283
      %711 = vmatpush1.msra.mxu0 %v282
      %712 = vmatprep.subr.mxu0 %v285
      %713 = vmatpush1.msra.mxu0 %v284
      %714 = vmatprep.subr.mxu0 %v287
      %715 = vmatpush1.msra.mxu0 %v286
      %716 = vmatprep.subr.mxu0 %v289
      %717 = vmatpush1.msra.mxu0 %v288
      %718 = vmatprep.subr.mxu0 %v291
      %719 = vmatpush1.msra.mxu0 %v290
      %720 = vmatprep.subr.mxu0 %v293
      %721 = vmatpush1.msra.mxu0 %v292
      %722 = vmatprep.subr.mxu0 %v295
      %723 = vmatpush1.msra.mxu0 %v294
      %724 = vmatprep.subr.mxu0 %v297
      %725 = vmatpush1.msra.mxu0 %v296
      %726 = vmatprep.subr.mxu0 %v299
      %727 = vmatpush1.msra.mxu0 %v298
      %728 = vmatprep.subr.mxu0 %v301
      %729 = vmatpush1.msra.mxu0 %v300
      %730 = vmatprep.subr.mxu0 %v303
      %731 = vmatpush1.msra.mxu0 %v302
      %732 = vmatprep.subr.mxu0 %v305
      %733 = vmatpush1.msra.mxu0 %v304
      %734 = vmatprep.subr.mxu0 %v307
      %735 = vmatpush1.msra.mxu0 %v306
      %736 = vmatprep.subr.mxu0 %v309
      %737 = vmatpush1.msra.mxu0 %v308
      %738 = vmatprep.subr.mxu0 %v311
      %739 = vmatpush1.msra.mxu0 %v310
      %740 = vmatprep.subr.mxu0 %v313
      %741 = vmatpush1.msra.mxu0 %v312
      %742 = vmatprep.subr.mxu0 %v315
      %743 = vmatpush1.msra.mxu0 %v314
      %744 = vmatprep.subr.mxu0 %v317
      %745 = vmatpush1.msra.mxu0 %v316
      %746 = vmatprep.subr.mxu0 %v319
      %747 = vmatpush1.msra.mxu0 %v318
      %748 = vmatprep.subr.mxu0 %v321
      %749 = vmatpush1.msra.mxu0 %v320
      %750 = vmatprep.subr.mxu0 %v323
      %751 = vmatpush1.msra.mxu0 %v322
      %752 = vmatprep.subr.mxu0 %v325
      %753 = vmatpush1.msra.mxu0 %v324
      %754 = vmatprep.mubr.f32.mxu0 %v689
      %755 = vmatmul.mubr.f32.gmra.mrb[0].mxu0 %v688
      %v756 = vpop.f32.mrb[0].mxu0
      %v757 = vadd.f32 0.0, %v756
      %v758 = vpop.f32.mrb[0].mxu0
      %v759 = vadd.f32 0.0, %v758
      %760 = vdwg.mxu0
      %v763 = vcombine.low %v757, %v759
      %s765 = scalar_lea.vmem %s197, 24
      %766 = vst [vmem:[%s765] sm:$0xff] %v763
      %p767 = scmp.lt.s32.totalorder %s15, 1
      %s768 = scalar_select %p767, %s15, 1
      %s769 = smul.addr %s768, 8
      %s770 = smul.addr %s769, 4
      %s771 = scalar_lea.vmem %s4, %s770
      // Predicated region
      $region37: #{fad_head_forward.1} parent=35 // pred_check
        %p772 = pneg %p122
      $region38: #{fad_head_forward.1} parent=35 // pred_check_branch
        %774 = sbr.rel (%p772) target = $region40
      $region39: #{fad_head_forward.1} parent=35 // pred_region
        _
      $region40: #{fad_head_forward.1} parent=35 // pred_fallthru
        _
    $region36: #{fad_head_forward.1} parent=5 // pred_fallthru
      _
    %p775 = scmp.le.s32.totalorder 2, %s10
    // Predicated region
    $region41: #{fad_head_forward.1} parent=5 // pred_check
      %p776 = pneg %p775
    $region42: #{fad_head_forward.1} parent=5 // pred_check_branch
      %778 = sbr.rel (%p776) target = $region44
    $region43: #{fad_head_forward.1} parent=5 // pred_region
      %s779 = ssub.s32 %s10, 2
      // Predicated region
      $region45: #{fad_head_forward.1} parent=43 // pred_check
        %p780 = pneg %p128
      $region46: #{fad_head_forward.1} parent=43 // pred_check_branch
        %782 = sbr.rel (%p780) target = $region48
      $region47: #{fad_head_forward.1} parent=43 // pred_region
        %p783 = scmp.lt.s32.totalorder %s16, 1
        %s784 = scalar_select %p783, %s16, 1
        %s785 = smul.addr %s784, 8
        %s786 = smul.addr %s785, 4
        %s787 = scalar_lea.vmem %s4, %s786
      $region48: #{fad_head_forward.1} parent=43 // pred_fallthru
        _
    $region44: #{fad_head_forward.1} parent=5 // pred_fallthru
      _
  $region6: #{fad_head_forward.1} parent=0 // loop_footer
    %s14 = sadd.s32 1, %s10
  $region7: #{fad_head_forward.1} parent=0 // loop_footer_branch
    %9 = sbr.rel target = $region3
  $region8: #{fad_head_forward.1} parent=0 // loop_exit
    _

</llo_original>
